<compile_context>
chip_gen: v7x
topology: tpu7x:2x2x1
jax: 0.10.0
libtpu: 0.0.40
codegen_flags: <defaults>
</compile_context>

<pallas_src>
import functools

import jax
import jax.numpy as jnp
from jax.experimental import pallas as pl
from jax.experimental.pallas import tpu as pltpu


def _round_up(x, m):
    return ((x + m - 1) // m) * m


def _fuse_kernel(v_ref,
                 w01_ref, b01_ref,      # [in_ch_p, c_p + dim_bn_p] concat of W_obs | W1
                 wf_ref, bf_ref,        # folded W2 @ W_cls
                 obs_ref, rep_ref,
                 *, c_p):
    v = v_ref[...]                                                     # bf16 [TB, in_ch_p]

    # One MXU pass for both heads that read v:
    #   out1[:, :c_p]  = v @ W_obs + b_obs        (observation logits)
    #   out1[:, c_p:]  = v @ W1    + b1           (bottleneck pre-activation)
    out1 = jnp.dot(v, w01_ref[...], preferred_element_type=jnp.float32) + b01_ref[...]

    obs_ref[...] = out1[:, :c_p].astype(obs_ref.dtype)

    # h = ReLU(v @ W1 + b1)   (slice starts at a 128-lane boundary)
    h = jnp.maximum(out1[:, c_p:], 0.0)

    # output_representation = (h @ W2 + b2) @ W_cls + b_cls
    #                       = h @ (W2 @ W_cls) + (b2 @ W_cls + b_cls)   [folded on host]
    rep = jnp.dot(h.astype(jnp.bfloat16), wf_ref[...],
                  preferred_element_type=jnp.float32) + bf_ref[...]
    rep_ref[...] = rep.astype(rep_ref.dtype)


def fuse_bottleneck_forward(v, params, *, tile_b=256):
    """Forward pass of fuse_bottleneck_withobservation in one Pallas kernel.

    v: [B, in_ch] float32
    params: dict with
        w1 [in_ch, dim_bn], b1 [1, dim_bn]        (bottleneck layer 1)
        w2 [dim_bn, in_ch], b2 [1, in_ch]         (bottleneck layer 2)
        w_cls [in_ch, num_class], b_cls [1, num_class]
        w_obs [in_ch, num_class], b_obs [1, num_class]
    Returns (output_observation, output_representation), each [B, num_class] f32.
    """
    B, in_ch = v.shape
    dim_bn = params["w1"].shape[1]
    num_class = params["w_cls"].shape[1]

    # --- Fold the two back-to-back Linears (no nonlinearity between them), in f32.
    w_fold = params["w2"] @ params["w_cls"]                    # [dim_bn, num_class]
    b_fold = params["b2"] @ params["w_cls"] + params["b_cls"]  # [1, num_class]

    # --- Pad to lane/sublane-friendly shapes (zero padding keeps math exact).
    in_ch_p = _round_up(in_ch, 128)
    dim_bn_p = _round_up(dim_bn, 128)
    c_p = _round_up(num_class, 128)
    tile_b = min(tile_b, _round_up(B, 8))        # small batch -> single small tile
    b_p = _round_up(B, tile_b)

    def pad2(a, rows, cols):
        return jnp.pad(a, ((0, rows - a.shape[0]), (0, cols - a.shape[1])))

    # bf16 weights/activations for the MXU; biases stay f32.
    v_p = pad2(v, b_p, in_ch_p).astype(jnp.bfloat16)
    wobs_p = pad2(params["w_obs"], in_ch_p, c_p)
    w1_p = pad2(params["w1"], in_ch_p, dim_bn_p)
    w01_p = jnp.concatenate([wobs_p, w1_p], axis=1).astype(jnp.bfloat16)   # [in_ch_p, c_p+dim_bn_p]
    bobs_p = pad2(params["b_obs"], 1, c_p)
    b1_p = pad2(params["b1"], 1, dim_bn_p)
    b01_p = jnp.concatenate([bobs_p, b1_p], axis=1).astype(jnp.float32)    # [1, c_p+dim_bn_p]
    wf_p = pad2(w_fold, dim_bn_p, c_p).astype(jnp.bfloat16)
    bf_p = pad2(b_fold, 1, c_p).astype(jnp.float32)

    n01 = c_p + dim_bn_p
    grid = (b_p // tile_b,)

    obs_p, rep_p = pl.pallas_call(
        functools.partial(_fuse_kernel, c_p=c_p),
        out_shape=(jax.ShapeDtypeStruct((b_p, c_p), jnp.float32),
                   jax.ShapeDtypeStruct((b_p, c_p), jnp.float32)),
        grid=grid,
        in_specs=[
            pl.BlockSpec((tile_b, in_ch_p), lambda i: (i, 0)),    # v: tiled over batch
            pl.BlockSpec((in_ch_p, n01), lambda i: (0, 0)),       # [W_obs | W1]: VMEM-resident
            pl.BlockSpec((1, n01), lambda i: (0, 0)),             # [b_obs | b1]
            pl.BlockSpec((dim_bn_p, c_p), lambda i: (0, 0)),      # W_fold
            pl.BlockSpec((1, c_p), lambda i: (0, 0)),             # b_fold
        ],
        out_specs=(pl.BlockSpec((tile_b, c_p), lambda i: (i, 0)),
                   pl.BlockSpec((tile_b, c_p), lambda i: (i, 0))),
        compiler_params=pltpu.CompilerParams(
            dimension_semantics=("parallel",)),
    )(v_p, w01_p, b01_p, wf_p, bf_p)

    return obs_p[:B, :num_class], rep_p[:B, :num_class]


def init_params(key, in_ch=256, dim_bottleneck=64, num_class=40):
    """Mimic the PyTorch module's init.

    Bottleneck Linears: PyTorch default init (uniform(-1/sqrt(fan_in), 1/sqrt(fan_in))
    for both weight and bias). Classifier Linears: normal(std=0.001), bias 0.
    Weights stored as [in_features, out_features].
    """
    k1, k1b, k2, k2b, kc, ko = jax.random.split(key, 6)

    def default_linear(kw, kb, fan_in, fan_out):
        bound = 1.0 / (fan_in ** 0.5)
        w = jax.random.uniform(kw, (fan_in, fan_out), jnp.float32, -bound, bound)
        b = jax.random.uniform(kb, (1, fan_out), jnp.float32, -bound, bound)
        return w, b

    w1, b1 = default_linear(k1, k1b, in_ch, dim_bottleneck)
    w2, b2 = default_linear(k2, k2b, dim_bottleneck, in_ch)

    return {
        "w1": w1, "b1": b1,
        "w2": w2, "b2": b2,
        "w_cls": 0.001 * jax.random.normal(kc, (in_ch, num_class), jnp.float32),
        "b_cls": jnp.zeros((1, num_class), jnp.float32),
        "w_obs": 0.001 * jax.random.normal(ko, (in_ch, num_class), jnp.float32),
        "b_obs": jnp.zeros((1, num_class), jnp.float32),
    }


def reference(v, p):
    """Pure-JAX f32 reference of the unfolded forward pass."""
    obs = v @ p["w_obs"] + p["b_obs"]
    h = jnp.maximum(v @ p["w1"] + p["b1"], 0.0)
    rep = h @ p["w2"] + p["b2"]
    out_rep = rep @ p["w_cls"] + p["b_cls"]
    return obs, out_rep


if __name__ == "__main__":
    # Small shapes consistent with the module (defaults are in_ch=2048, num_class=395,
    # dim_bottleneck=256); here: batch=8, in_ch=256, dim_bottleneck=64, num_class=40.
    B, IN_CH, DIM_BN, NUM_CLASS = 8, 256, 64, 40

    key = jax.random.PRNGKey(0)
    k_x, k_p = jax.random.split(key)
    v = jax.random.normal(k_x, (B, IN_CH), dtype=jnp.float32)
    params = init_params(k_p, in_ch=IN_CH, dim_bottleneck=DIM_BN, num_class=NUM_CLASS)

    obs, out_rep = fuse_bottleneck_forward(v, params)
    obs = jax.block_until_ready(obs)
    out_rep = jax.block_until_ready(out_rep)

    obs_ref, rep_ref = reference(v, params)
    obs_ref = jax.block_until_ready(obs_ref)
    rep_ref = jax.block_until_ready(rep_ref)

    assert obs.shape == (B, NUM_CLASS), obs.shape
    assert out_rep.shape == (B, NUM_CLASS), out_rep.shape
    # bf16 weights + folded Linear change results at ~1e-4 level; tolerance loosened accordingly.
    assert jnp.allclose(obs, obs_ref, atol=2e-3, rtol=2e-2), "observation mismatch vs JAX reference"
    assert jnp.allclose(out_rep, rep_ref, atol=2e-3, rtol=2e-2), "representation mismatch vs JAX reference"

    print("KERNEL_OK")
</pallas_src>

<mosaic_0001>
module attributes {stable_mosaic.version = 11 : i64} {
  func.func @_fuse_kernel(%arg0: i32, %arg1: memref<8x256xbf16, #tpu.memory_space<vmem>>, %arg2: memref<256x256xbf16, #tpu.memory_space<vmem>>, %arg3: memref<1x256xf32, #tpu.memory_space<vmem>>, %arg4: memref<128x128xbf16, #tpu.memory_space<vmem>>, %arg5: memref<1x128xf32, #tpu.memory_space<vmem>>, %arg6: memref<8x128xf32, #tpu.memory_space<vmem>>, %arg7: memref<8x128xf32, #tpu.memory_space<vmem>>) attributes {dimension_semantics = [#tpu.dimension_semantics<parallel>], iteration_bounds = array<i64: 1>, scalar_prefetch = 0 : i64, scratch_operands = 0 : i64, tpu.core_type = #tpu.core_type<tc>, window_params = [{transform_indices = @transform_0, window_bounds = array<i64: 8, 256>}, {pipeline_mode = #tpu.pipeline_mode<synchronous>, transform_indices = @transform_1, window_bounds = array<i64: 256, 256>}, {pipeline_mode = #tpu.pipeline_mode<synchronous>, transform_indices = @transform_2, window_bounds = array<i64: 1, 256>}, {pipeline_mode = #tpu.pipeline_mode<synchronous>, transform_indices = @transform_3, window_bounds = array<i64: 128, 128>}, {pipeline_mode = #tpu.pipeline_mode<synchronous>, transform_indices = @transform_4, window_bounds = array<i64: 1, 128>}, {transform_indices = @transform_5, window_bounds = array<i64: 8, 128>}, {transform_indices = @transform_6, window_bounds = array<i64: 8, 128>}]} {
    %c0 = arith.constant 0 : index
    %c0_0 = arith.constant 0 : index
    %0 = vector.load %arg1[%c0, %c0_0] : memref<8x256xbf16, #tpu.memory_space<vmem>>, vector<8x256xbf16>
    %c0_1 = arith.constant 0 : index
    %c0_2 = arith.constant 0 : index
    %1 = vector.load %arg2[%c0_1, %c0_2] : memref<256x256xbf16, #tpu.memory_space<vmem>>, vector<256x256xbf16>
    %cst = arith.constant dense<0.000000e+00> : vector<8x256xf32>
    %2 = tpu.matmul %0, %1, %cst {dimension_numbers = #tpu.dot_dimension_numbers<[1], [0], [0], [1], [0, 0, 1, 1], [], []>} : vector<8x256xbf16>, vector<256x256xbf16>, vector<8x256xf32> -> vector<8x256xf32>
    %c0_3 = arith.constant 0 : index
    %c0_4 = arith.constant 0 : index
    %3 = vector.load %arg3[%c0_3, %c0_4] : memref<1x256xf32, #tpu.memory_space<vmem>>, vector<1x256xf32>
    %4 = vector.broadcast %3 : vector<1x256xf32> to vector<8x256xf32>
    %5 = arith.addf %2, %4 : vector<8x256xf32>
    %6 = vector.extract_strided_slice %5 {offsets = [0, 0], sizes = [8, 128], strides = [1, 1]} : vector<8x256xf32> to vector<8x128xf32>
    %c0_5 = arith.constant 0 : index
    %c0_6 = arith.constant 0 : index
    %7 = vector.load %arg6[%c0_5, %c0_6] : memref<8x128xf32, #tpu.memory_space<vmem>>, vector<8x128xf32>
    tpu.vector_store %arg6[%c0_5, %c0_6], %6 {strides = array<i32>} : memref<8x128xf32, #tpu.memory_space<vmem>>, vector<8x128xf32>,
    %8 = vector.extract_strided_slice %5 {offsets = [0, 128], sizes = [8, 128], strides = [1, 1]} : vector<8x256xf32> to vector<8x128xf32>
    %cst_7 = arith.constant 0.000000e+00 : f32
    %9 = vector.broadcast %cst_7 : f32 to vector<8x128xf32>
    %10 = arith.maximumf %8, %9 : vector<8x128xf32>
    %11 = arith.truncf %10 : vector<8x128xf32> to vector<8x128xbf16>
    %c0_8 = arith.constant 0 : index
    %c0_9 = arith.constant 0 : index
    %12 = vector.load %arg4[%c0_8, %c0_9] : memref<128x128xbf16, #tpu.memory_space<vmem>>, vector<128x128xbf16>
    %cst_10 = arith.constant dense<0.000000e+00> : vector<8x128xf32>
    %13 = tpu.matmul %11, %12, %cst_10 {dimension_numbers = #tpu.dot_dimension_numbers<[1], [0], [0], [1], [0, 0, 1, 1], [], []>} : vector<8x128xbf16>, vector<128x128xbf16>, vector<8x128xf32> -> vector<8x128xf32>
    %c0_11 = arith.constant 0 : index
    %c0_12 = arith.constant 0 : index
    %14 = vector.load %arg5[%c0_11, %c0_12] : memref<1x128xf32, #tpu.memory_space<vmem>>, vector<1x128xf32>
    %15 = vector.broadcast %14 : vector<1x128xf32> to vector<8x128xf32>
    %16 = arith.addf %13, %15 : vector<8x128xf32>
    %c0_13 = arith.constant 0 : index
    %c0_14 = arith.constant 0 : index
    %17 = vector.load %arg7[%c0_13, %c0_14] : memref<8x128xf32, #tpu.memory_space<vmem>>, vector<8x128xf32>
    tpu.vector_store %arg7[%c0_13, %c0_14], %16 {strides = array<i32>} : memref<8x128xf32, #tpu.memory_space<vmem>>, vector<8x128xf32>,
    return
  }
  func.func @transform_0(%arg0: i32) -> (i32, i32) {
    %c0_i32 = arith.constant 0 : i32
    %c0_i32_0 = arith.constant 0 : i32
    return %arg0, %c0_i32 : i32, i32
  }
  func.func @transform_1(%arg0: i32) -> (i32, i32) {
    %c0_i32 = arith.constant 0 : i32
    %c0_i32_0 = arith.constant 0 : i32
    %c0_i32_1 = arith.constant 0 : i32
    return %c0_i32, %c0_i32_0 : i32, i32
  }
  func.func @transform_2(%arg0: i32) -> (i32, i32) {
    %c0_i32 = arith.constant 0 : i32
    %c0_i32_0 = arith.constant 0 : i32
    %c0_i32_1 = arith.constant 0 : i32
    return %c0_i32, %c0_i32_0 : i32, i32
  }
  func.func @transform_3(%arg0: i32) -> (i32, i32) {
    %c0_i32 = arith.constant 0 : i32
    %c0_i32_0 = arith.constant 0 : i32
    %c0_i32_1 = arith.constant 0 : i32
    return %c0_i32, %c0_i32_0 : i32, i32
  }
  func.func @transform_4(%arg0: i32) -> (i32, i32) {
    %c0_i32 = arith.constant 0 : i32
    %c0_i32_0 = arith.constant 0 : i32
    %c0_i32_1 = arith.constant 0 : i32
    return %c0_i32, %c0_i32_0 : i32, i32
  }
  func.func @transform_5(%arg0: i32) -> (i32, i32) {
    %c0_i32 = arith.constant 0 : i32
    %c0_i32_0 = arith.constant 0 : i32
    return %arg0, %c0_i32 : i32, i32
  }
  func.func @transform_6(%arg0: i32) -> (i32, i32) {
    %c0_i32 = arith.constant 0 : i32
    %c0_i32_0 = arith.constant 0 : i32
    return %arg0, %c0_i32 : i32, i32
  }
}

</mosaic_0001>

<llo_original>
// kernel: tpu_custom_call.1
$region0: #{tpu_custom_call.1}
  #allocation0 [shape = 'u32[]', space=smem, size = 0x4, offset = 0x4, fixed_abs, tag = 'smem constant byte address 0x4 - core index']
  #allocation1 [shape = 'u32[144,128]{1,0:T(1,128)}', space=vmem, size = 0x12000, scoped, tag = 'internal scratch']
  %s0 = inlined_call_operand.hbm [shape: bf16[8,256], index: 0, kind: input, shape index: {}]
  %s1 = inlined_call_operand.hbm [shape: bf16[256,256], index: 1, kind: input, shape index: {}]
  %s2 = inlined_call_operand.vmem [shape: f32[1,256], index: 2, kind: input, shape index: {}]
  %s3 = inlined_call_operand.hbm [shape: bf16[128,128], index: 3, kind: input, shape index: {}]
  %s4 = inlined_call_operand.vmem [shape: f32[1,128], index: 4, kind: input, shape index: {}]
  %s5 = inlined_call_operand.hbm [shape: f32[8,128], index: 5, kind: output, shape index: {0}]
  %s6 = inlined_call_operand.hbm [shape: f32[8,128], index: 6, kind: output, shape index: {1}]
  %7 = xla_tuple %s5, %s6
  %s8 = sld [smem:[#allocation0]]
  $region50: #{tpu_custom_call.1} parent=0
    _
  %s10 = ssub.s32 1, %s8
  %s11 = scalar_select 0, %s10, %s8
  $region1: #{tpu_custom_call.1} parent=0
    #allocation2 [shape = 'u8[4096]{0}', space=vmem, size = 0x1000, scoped, tag = 'input window, operand 0, single buffered']
    #allocation3 [shape = 's32[1]{0}', space=sflag, size = 0x4, scoped, tag = 'scoped memory for tpu_custom_call.1']
    #allocation4 [shape = 's32[1]{0}', space=sflag, size = 0x4, scoped, tag = 'scoped memory for tpu_custom_call.1']
    #allocation5 [shape = 'u8[131072]{0}', space=vmem, size = 0x20000, scoped, tag = 'input window, operand 1, single buffered']
    #allocation6 [shape = 's32[1]{0}', space=sflag, size = 0x4, scoped, tag = 'scoped memory for tpu_custom_call.1']
    #allocation7 [shape = 'u8[32768]{0}', space=vmem, size = 0x8000, scoped, tag = 'input window, operand 3, single buffered']
    #allocation8 [shape = 'u8[4096]{0}', space=vmem, size = 0x1000, scoped, tag = 'output window, operand 0, single buffered']
    #allocation9 [shape = 'u8[4096]{0}', space=vmem, size = 0x1000, scoped, tag = 'output window, operand 1, single buffered']
    #allocation10 [shape = 's32[1]{0}', space=sflag, size = 0x4, scoped, tag = 'scoped memory for tpu_custom_call.1']
    %12 = vsyncpa [#allocation3], 0
    %13 = vsyncpa [#allocation6], 0
    %14 = vsyncpa [#allocation4], 0
    %15 = vsyncpa [#allocation10], 0
    // Predicated region
    $region2: #{tpu_custom_call.1} parent=1 // pred_check
      _
    $region3: #{tpu_custom_call.1} parent=1 // pred_check_branch
      %17 = sbr.rel (0) target = $region5
    $region4: #{tpu_custom_call.1} parent=1 // pred_region
      %s19 = ssub.s32 128, 128
      %20 = vsyncadd [#allocation3], %s19
      %s22 = sshll.u32 [#allocation2], 4
      %s23 = int_to_ptr.vmem [resolvable:$true] %s22
      %25 = dma.hbm_to_vmem [thread:$0]  %s0, 128, %s23, [#allocation3]
    $region5: #{tpu_custom_call.1} parent=1 // pred_fallthru
      _
    // Predicated region
    $region6: #{tpu_custom_call.1} parent=1 // pred_check
      _
    $region7: #{tpu_custom_call.1} parent=1 // pred_check_branch
      %27 = sbr.rel (0) target = $region9
    $region8: #{tpu_custom_call.1} parent=1 // pred_region
      %s29 = ssub.s32 4096, 4096
      %30 = vsyncadd [#allocation6], %s29
      %s31 = sshll.u32 [#allocation5], 4
      %s32 = int_to_ptr.vmem [resolvable:$true] %s31
      %37 = dma.hbm_to_vmem [thread:$0]  %s1, 4096, %s32, [#allocation6], 128, 128, 8
    $region9: #{tpu_custom_call.1} parent=1 // pred_fallthru
      _
    // Predicated region
    $region10: #{tpu_custom_call.1} parent=1 // pred_check
      _
    $region11: #{tpu_custom_call.1} parent=1 // pred_check_branch
      %39 = sbr.rel (0) target = $region13
    $region12: #{tpu_custom_call.1} parent=1 // pred_region
      _
    $region13: #{tpu_custom_call.1} parent=1 // pred_fallthru
      _
    // Predicated region
    $region14: #{tpu_custom_call.1} parent=1 // pred_check
      _
    $region15: #{tpu_custom_call.1} parent=1 // pred_check_branch
      %41 = sbr.rel (0) target = $region17
    $region16: #{tpu_custom_call.1} parent=1 // pred_region
      %s43 = ssub.s32 1024, 1024
      %44 = vsyncadd [#allocation6], %s43
      %s45 = sshll.u32 [#allocation7], 4
      %s46 = int_to_ptr.vmem [resolvable:$true] %s45
      %51 = dma.hbm_to_vmem [thread:$0]  %s3, 1024, %s46, [#allocation6], 64, 64, 4
    $region17: #{tpu_custom_call.1} parent=1 // pred_fallthru
      _
    // Predicated region
    $region18: #{tpu_custom_call.1} parent=1 // pred_check
      _
    $region19: #{tpu_custom_call.1} parent=1 // pred_check_branch
      %53 = sbr.rel (0) target = $region21
    $region20: #{tpu_custom_call.1} parent=1 // pred_region
      _
    $region21: #{tpu_custom_call.1} parent=1 // pred_fallthru
      _
    // Predicated region
    $region22: #{tpu_custom_call.1} parent=1 // pred_check
      _
    $region23: #{tpu_custom_call.1} parent=1 // pred_check_branch
      %55 = sbr.rel (0) target = $region25
    $region24: #{tpu_custom_call.1} parent=1 // pred_region
      %56 = dma.done [#allocation3], 128
    $region25: #{tpu_custom_call.1} parent=1 // pred_fallthru
      _
    // Predicated region
    $region26: #{tpu_custom_call.1} parent=1 // pred_check
      _
    $region27: #{tpu_custom_call.1} parent=1 // pred_check_branch
      %58 = sbr.rel (0) target = $region29
    $region28: #{tpu_custom_call.1} parent=1 // pred_region
      %59 = dma.done [#allocation6], 4096
    $region29: #{tpu_custom_call.1} parent=1 // pred_fallthru
      _
    // Predicated region
    $region30: #{tpu_custom_call.1} parent=1 // pred_check
      _
    $region31: #{tpu_custom_call.1} parent=1 // pred_check_branch
      %61 = sbr.rel (0) target = $region33
    $region32: #{tpu_custom_call.1} parent=1 // pred_region
      %62 = dma.done [#allocation6], 1024
    $region33: #{tpu_custom_call.1} parent=1 // pred_fallthru
      _
    %v64 = vld [vmem:[#allocation2] sm:$0xff]
    %v65 = vld [vmem:[#allocation5] sm:$0xff]
    %v66 = vld [vmem:[#allocation5 + $0x8] sm:$0xff]
    %v67 = vld [vmem:[#allocation5 + $0x10] sm:$0xff]
    %v68 = vld [vmem:[#allocation5 + $0x18] sm:$0xff]
    %v69 = vld [vmem:[#allocation5 + $0x20] sm:$0xff]
    %v70 = vld [vmem:[#allocation5 + $0x28] sm:$0xff]
    %v71 = vld [vmem:[#allocation5 + $0x30] sm:$0xff]
    %v72 = vld [vmem:[#allocation5 + $0x38] sm:$0xff]
    %v73 = vld [vmem:[#allocation5 + $0x40] sm:$0xff]
    %v74 = vld [vmem:[#allocation5 + $0x48] sm:$0xff]
    %v75 = vld [vmem:[#allocation5 + $0x50] sm:$0xff]
    %v76 = vld [vmem:[#allocation5 + $0x58] sm:$0xff]
    %v77 = vld [vmem:[#allocation5 + $0x60] sm:$0xff]
    %v78 = vld [vmem:[#allocation5 + $0x68] sm:$0xff]
    %v79 = vld [vmem:[#allocation5 + $0x70] sm:$0xff]
    %v80 = vld [vmem:[#allocation5 + $0x78] sm:$0xff]
    %v81 = vld [vmem:[#allocation5 + $0x80] sm:$0xff]
    %v82 = vld [vmem:[#allocation5 + $0x88] sm:$0xff]
    %v83 = vld [vmem:[#allocation5 + $0x90] sm:$0xff]
    %v84 = vld [vmem:[#allocation5 + $0x98] sm:$0xff]
    %v85 = vld [vmem:[#allocation5 + $0xa0] sm:$0xff]
    %v86 = vld [vmem:[#allocation5 + $0xa8] sm:$0xff]
    %v87 = vld [vmem:[#allocation5 + $0xb0] sm:$0xff]
    %v88 = vld [vmem:[#allocation5 + $0xb8] sm:$0xff]
    %v89 = vld [vmem:[#allocation5 + $0xc0] sm:$0xff]
    %v90 = vld [vmem:[#allocation5 + $0xc8] sm:$0xff]
    %v91 = vld [vmem:[#allocation5 + $0xd0] sm:$0xff]
    %v92 = vld [vmem:[#allocation5 + $0xd8] sm:$0xff]
    %v93 = vld [vmem:[#allocation5 + $0xe0] sm:$0xff]
    %v94 = vld [vmem:[#allocation5 + $0xe8] sm:$0xff]
    %v95 = vld [vmem:[#allocation5 + $0xf0] sm:$0xff]
    %v96 = vld [vmem:[#allocation5 + $0xf8] sm:$0xff]
    %v97 = vld [vmem:[%s2] sm:$0x3]
    %v99 = vlaneseq
    %v100 = vshrl.u32 %v99, 7
    %v101 = vsub.s32 0, %v100
    %v102 = vrot.slane %v97, %v101
    %v103 = vlaneseq
    %v104 = vshrl.u32 %v103, 7
    %v105 = vsub.s32 1, %v104
    %v106 = vrot.slane %v97, %v105
    %v110 = vunpack.c.l.b16 %v64
    %v111 = vunpack.c.h.b16 %v64
    %v112 = vpack.c.b16 %v110, %v110
    %v113 = vpack.c.b16 %v111, %v111
    %v148 = vunpack.c.l.b16 %v65
    %v149 = vunpack.c.h.b16 %v65
    %v150 = vunpack.c.l.b16 %v66
    %v151 = vunpack.c.h.b16 %v66
    %v152 = vunpack.c.l.b16 %v67
    %v153 = vunpack.c.h.b16 %v67
    %v154 = vunpack.c.l.b16 %v68
    %v155 = vunpack.c.h.b16 %v68
    %v156 = vunpack.c.l.b16 %v69
    %v157 = vunpack.c.h.b16 %v69
    %v158 = vunpack.c.l.b16 %v70
    %v159 = vunpack.c.h.b16 %v70
    %v160 = vunpack.c.l.b16 %v71
    %v161 = vunpack.c.h.b16 %v71
    %v162 = vunpack.c.l.b16 %v72
    %v163 = vunpack.c.h.b16 %v72
    %v164 = vunpack.c.l.b16 %v73
    %v165 = vunpack.c.h.b16 %v73
    %v166 = vunpack.c.l.b16 %v74
    %v167 = vunpack.c.h.b16 %v74
    %v168 = vunpack.c.l.b16 %v75
    %v169 = vunpack.c.h.b16 %v75
    %v170 = vunpack.c.l.b16 %v76
    %v171 = vunpack.c.h.b16 %v76
    %v172 = vunpack.c.l.b16 %v77
    %v173 = vunpack.c.h.b16 %v77
    %v174 = vunpack.c.l.b16 %v78
    %v175 = vunpack.c.h.b16 %v78
    %v176 = vunpack.c.l.b16 %v79
    %v177 = vunpack.c.h.b16 %v79
    %v178 = vunpack.c.l.b16 %v80
    %v179 = vunpack.c.h.b16 %v80
    %v180 = vunpack.c.l.b16 %v81
    %v181 = vunpack.c.h.b16 %v81
    %v182 = vunpack.c.l.b16 %v82
    %v183 = vunpack.c.h.b16 %v82
    %v184 = vunpack.c.l.b16 %v83
    %v185 = vunpack.c.h.b16 %v83
    %v186 = vunpack.c.l.b16 %v84
    %v187 = vunpack.c.h.b16 %v84
    %v188 = vunpack.c.l.b16 %v85
    %v189 = vunpack.c.h.b16 %v85
    %v190 = vunpack.c.l.b16 %v86
    %v191 = vunpack.c.h.b16 %v86
    %v192 = vunpack.c.l.b16 %v87
    %v193 = vunpack.c.h.b16 %v87
    %v194 = vunpack.c.l.b16 %v88
    %v195 = vunpack.c.h.b16 %v88
    %v196 = vunpack.c.l.b16 %v89
    %v197 = vunpack.c.h.b16 %v89
    %v198 = vunpack.c.l.b16 %v90
    %v199 = vunpack.c.h.b16 %v90
    %v200 = vunpack.c.l.b16 %v91
    %v201 = vunpack.c.h.b16 %v91
    %v202 = vunpack.c.l.b16 %v92
    %v203 = vunpack.c.h.b16 %v92
    %v204 = vunpack.c.l.b16 %v93
    %v205 = vunpack.c.h.b16 %v93
    %v206 = vunpack.c.l.b16 %v94
    %v207 = vunpack.c.h.b16 %v94
    %v208 = vunpack.c.l.b16 %v95
    %v209 = vunpack.c.h.b16 %v95
    %v210 = vunpack.c.l.b16 %v96
    %v211 = vunpack.c.h.b16 %v96
    %v212 = vpack.c.b16 %v150, %v148
    %v213 = vpack.c.b16 %v151, %v149
    %v214 = vpack.c.b16 %v154, %v152
    %v215 = vpack.c.b16 %v155, %v153
    %v216 = vpack.c.b16 %v158, %v156
    %v217 = vpack.c.b16 %v159, %v157
    %v218 = vpack.c.b16 %v162, %v160
    %v219 = vpack.c.b16 %v163, %v161
    %v220 = vpack.c.b16 %v166, %v164
    %v221 = vpack.c.b16 %v167, %v165
    %v222 = vpack.c.b16 %v170, %v168
    %v223 = vpack.c.b16 %v171, %v169
    %v224 = vpack.c.b16 %v174, %v172
    %v225 = vpack.c.b16 %v175, %v173
    %v226 = vpack.c.b16 %v178, %v176
    %v227 = vpack.c.b16 %v179, %v177
    %v228 = vpack.c.b16 %v182, %v180
    %v229 = vpack.c.b16 %v183, %v181
    %v230 = vpack.c.b16 %v186, %v184
    %v231 = vpack.c.b16 %v187, %v185
    %v232 = vpack.c.b16 %v190, %v188
    %v233 = vpack.c.b16 %v191, %v189
    %v234 = vpack.c.b16 %v194, %v192
    %v235 = vpack.c.b16 %v195, %v193
    %v236 = vpack.c.b16 %v198, %v196
    %v237 = vpack.c.b16 %v199, %v197
    %v238 = vpack.c.b16 %v202, %v200
    %v239 = vpack.c.b16 %v203, %v201
    %v240 = vpack.c.b16 %v206, %v204
    %v241 = vpack.c.b16 %v207, %v205
    %v242 = vpack.c.b16 %v210, %v208
    %v243 = vpack.c.b16 %v211, %v209
    %276 = vmatprep.subr.bf16.mxu0 %v213
    %277 = vmatpush1.bf16.msra.mxu0 %v212
    %278 = vmatprep.subr.bf16.mxu0 %v215
    %279 = vmatpush1.bf16.msra.mxu0 %v214
    %280 = vmatprep.subr.bf16.mxu0 %v217
    %281 = vmatpush1.bf16.msra.mxu0 %v216
    %282 = vmatprep.subr.bf16.mxu0 %v219
    %283 = vmatpush1.bf16.msra.mxu0 %v218
    %284 = vmatprep.subr.bf16.mxu0 %v221
    %285 = vmatpush1.bf16.msra.mxu0 %v220
    %286 = vmatprep.subr.bf16.mxu0 %v223
    %287 = vmatpush1.bf16.msra.mxu0 %v222
    %288 = vmatprep.subr.bf16.mxu0 %v225
    %289 = vmatpush1.bf16.msra.mxu0 %v224
    %290 = vmatprep.subr.bf16.mxu0 %v227
    %291 = vmatpush1.bf16.msra.mxu0 %v226
    %292 = vmatprep.subr.bf16.mxu0 %v229
    %293 = vmatpush1.bf16.msra.mxu0 %v228
    %294 = vmatprep.subr.bf16.mxu0 %v231
    %295 = vmatpush1.bf16.msra.mxu0 %v230
    %296 = vmatprep.subr.bf16.mxu0 %v233
    %297 = vmatpush1.bf16.msra.mxu0 %v232
    %298 = vmatprep.subr.bf16.mxu0 %v235
    %299 = vmatpush1.bf16.msra.mxu0 %v234
    %300 = vmatprep.subr.bf16.mxu0 %v237
    %301 = vmatpush1.bf16.msra.mxu0 %v236
    %302 = vmatprep.subr.bf16.mxu0 %v239
    %303 = vmatpush1.bf16.msra.mxu0 %v238
    %304 = vmatprep.subr.bf16.mxu0 %v241
    %305 = vmatpush1.bf16.msra.mxu0 %v240
    %306 = vmatprep.subr.bf16.mxu0 %v243
    %307 = vmatpush1.bf16.msra.mxu0 %v242
    %308 = vmatprep.mubr.bf16.mxu0 %v113
    %309 = vmatmul.mubr.bf16.gmra.mrb[0].mxu0 %v112
    %v310 = vpop.f32.mrb[0].mxu0
    %v311 = vadd.f32 %v102, %v310
    %v312 = vpop.f32.mrb[0].mxu0
    %v313 = vadd.f32 %v106, %v312
    %v314 = vpop.f32.mrb[0].mxu0
    %v315 = vpop.f32.mrb[0].mxu0
    %316 = vdwg.mxu0
    %317 = vst [vmem:[#allocation8] sm:$0xff] %v311
    %v318 = vmax.f32 %v313, 0.0
    %v319 = vpack.c.bf16 %v318, %v318
    %v320 = vld [vmem:[#allocation7] sm:$0xf]
    %v321 = vld [vmem:[#allocation7 + $0x4] sm:$0xf]
    %v322 = vld [vmem:[#allocation7 + $0x8] sm:$0xf]
    %v323 = vld [vmem:[#allocation7 + $0xc] sm:$0xf]
    %v324 = vld [vmem:[#allocation7 + $0x10] sm:$0xf]
    %v325 = vld [vmem:[#allocation7 + $0x14] sm:$0xf]
    %v326 = vld [vmem:[#allocation7 + $0x18] sm:$0xf]
    %v327 = vld [vmem:[#allocation7 + $0x1c] sm:$0xf]
    %v328 = vld [vmem:[#allocation7 + $0x20] sm:$0xf]
    %v329 = vld [vmem:[#allocation7 + $0x24] sm:$0xf]
    %v330 = vld [vmem:[#allocation7 + $0x28] sm:$0xf]
    %v331 = vld [vmem:[#allocation7 + $0x2c] sm:$0xf]
    %v332 = vld [vmem:[#allocation7 + $0x30] sm:$0xf]
    %v333 = vld [vmem:[#allocation7 + $0x34] sm:$0xf]
    %v334 = vld [vmem:[#allocation7 + $0x38] sm:$0xf]
    %v335 = vld [vmem:[#allocation7 + $0x3c] sm:$0xf]
    %v336 = vld [vmem:[%s4] sm:$0x1]
    %v338 = vlaneseq
    %v339 = vshrl.u32 %v338, 7
    %v340 = vsub.s32 0, %v339
    %v341 = vrot.slane %v336, %v340
    %v359 = vunpack.c.l.b16 %v320
    %v360 = vunpack.c.l.b16 %v321
    %v361 = vunpack.c.l.b16 %v322
    %v362 = vunpack.c.l.b16 %v323
    %v363 = vunpack.c.l.b16 %v324
    %v364 = vunpack.c.l.b16 %v325
    %v365 = vunpack.c.l.b16 %v326
    %v366 = vunpack.c.l.b16 %v327
    %v367 = vunpack.c.l.b16 %v328
    %v368 = vunpack.c.l.b16 %v329
    %v369 = vunpack.c.l.b16 %v330
    %v370 = vunpack.c.l.b16 %v331
    %v371 = vunpack.c.l.b16 %v332
    %v372 = vunpack.c.l.b16 %v333
    %v373 = vunpack.c.l.b16 %v334
    %v374 = vunpack.c.l.b16 %v335
    %v375 = vpack.c.b16 %v360, %v359
    %v376 = vpack.c.b16 %v362, %v361
    %v377 = vpack.c.b16 %v364, %v363
    %v378 = vpack.c.b16 %v366, %v365
    %v379 = vpack.c.b16 %v368, %v367
    %v380 = vpack.c.b16 %v370, %v369
    %v381 = vpack.c.b16 %v372, %v371
    %v382 = vpack.c.b16 %v374, %v373
    %391 = vmatprep.subr.bf16.mxu0 0
    %392 = vmatpush1.bf16.msra.mxu0 %v375
    %393 = vmatprep.subr.bf16.mxu0 0
    %394 = vmatpush1.bf16.msra.mxu0 %v376
    %395 = vmatprep.subr.bf16.mxu0 0
    %396 = vmatpush1.bf16.msra.mxu0 %v377
    %397 = vmatprep.subr.bf16.mxu0 0
    %398 = vmatpush1.bf16.msra.mxu0 %v378
    %399 = vmatprep.subr.bf16.mxu0 0
    %400 = vmatpush1.bf16.msra.mxu0 %v379
    %401 = vmatprep.subr.bf16.mxu0 0
    %402 = vmatpush1.bf16.msra.mxu0 %v380
    %403 = vmatprep.subr.bf16.mxu0 0
    %404 = vmatpush1.bf16.msra.mxu0 %v381
    %405 = vmatprep.subr.bf16.mxu0 0
    %406 = vmatpush1.bf16.msra.mxu0 %v382
    %407 = vmatprep.subr.bf16.mxu0 0
    %408 = vmatpush1.bf16.msra.mxu0 0
    %409 = vmatprep.subr.bf16.mxu0 0
    %410 = vmatpush1.bf16.msra.mxu0 0
    %411 = vmatprep.subr.bf16.mxu0 0
    %412 = vmatpush1.bf16.msra.mxu0 0
    %413 = vmatprep.subr.bf16.mxu0 0
    %414 = vmatpush1.bf16.msra.mxu0 0
    %415 = vmatprep.subr.bf16.mxu0 0
    %416 = vmatpush1.bf16.msra.mxu0 0
    %417 = vmatprep.subr.bf16.mxu0 0
    %418 = vmatpush1.bf16.msra.mxu0 0
    %419 = vmatprep.subr.bf16.mxu0 0
    %420 = vmatpush1.bf16.msra.mxu0 0
    %421 = vmatprep.subr.bf16.mxu0 0
    %422 = vmatpush1.bf16.msra.mxu0 0
    %423 = vmatprep.mubr.bf16.mxu0 0
    %424 = vmatmul.mubr.bf16.gmra.mrb[0].mxu0 %v319
    %v425 = vpop.f32.mrb[0].mxu0
    %v426 = vadd.f32 %v341, %v425
    %v427 = vpop.f32.mrb[0].mxu0
    %v428 = vpop.f32.mrb[0].mxu0
    %v429 = vpop.f32.mrb[0].mxu0
    %430 = vdwg.mxu0
    %431 = vst [vmem:[#allocation9] sm:$0xff] %v426
    // Predicated region
    $region34: #{tpu_custom_call.1} parent=1 // pred_check
      _
    $region35: #{tpu_custom_call.1} parent=1 // pred_check_branch
      %433 = sbr.rel (0) target = $region37
    $region36: #{tpu_custom_call.1} parent=1 // pred_region
      %s435 = ssub.s32 128, 128
      %436 = vsyncadd [#allocation4], %s435
      %s438 = sshll.u32 [#allocation8], 4
      %s439 = int_to_ptr.vmem [resolvable:$true] %s438
      %441 = dma.vmem_to_hbm [thread:$0]  %s439, 128, %s5, [#allocation4]
    $region37: #{tpu_custom_call.1} parent=1 // pred_fallthru
      _
    // Predicated region
    $region38: #{tpu_custom_call.1} parent=1 // pred_check
      _
    $region39: #{tpu_custom_call.1} parent=1 // pred_check_branch
      %443 = sbr.rel (0) target = $region41
    $region40: #{tpu_custom_call.1} parent=1 // pred_region
      %s445 = ssub.s32 128, 128
      %446 = vsyncadd [#allocation10], %s445
      %s448 = sshll.u32 [#allocation9], 4
      %s449 = int_to_ptr.vmem [resolvable:$true] %s448
      %451 = dma.vmem_to_hbm [thread:$0]  %s449, 128, %s6, [#allocation10]
    $region41: #{tpu_custom_call.1} parent=1 // pred_fallthru
      _
    // Predicated region
    $region42: #{tpu_custom_call.1} parent=1 // pred_check
      _
    $region43: #{tpu_custom_call.1} parent=1 // pred_check_branch
      %453 = sbr.rel (0) target = $region45
    $region44: #{tpu_custom_call.1} parent=1 // pred_region
      %454 = dma.done [#allocation4], 128
    $region45: #{tpu_custom_call.1} parent=1 // pred_fallthru
      _
    // Predicated region
    $region46: #{tpu_custom_call.1} parent=1 // pred_check
      _
    $region47: #{tpu_custom_call.1} parent=1 // pred_check_branch
      %456 = sbr.rel (0) target = $region49
    $region48: #{tpu_custom_call.1} parent=1 // pred_region
      %457 = dma.done [#allocation10], 128
    $region49: #{tpu_custom_call.1} parent=1 // pred_fallthru
      _
    %458 = vsyncpa [#allocation3], 1
    %459 = vsyncpa [#allocation6], 1
    %460 = vsyncpa [#allocation4], 1
    %461 = vsyncpa [#allocation10], 1

</llo_original>
